<compile_context>
chip_gen: v6e
topology: v6e:2x2x1
jax: 0.10.0
libtpu: 0.0.40
codegen_flags: <defaults>
</compile_context>

<pallas_src>
import jax
import jax.numpy as jnp
from jax.experimental import pallas as pl
from jax.experimental.pallas import tpu as pltpu

_LANE = 128     # lane width (last dim)
_SUBLANE = 8    # f32 sublane quantum (second-to-last dim)


def _round_up(n, m):
    return ((n + m - 1) // m) * m


# ----------------------------------------------------------------------------
# Kernel: four matmuls + bias adds + ReLUs fully fused; weights VMEM-resident.
# ----------------------------------------------------------------------------
def dqn_kernel(x_ref, w1_ref, w23_ref, w4_ref, b123_ref, b4_ref, o_ref):
    wd = w1_ref.dtype                      # f32 or bf16 (MXU input dtype)
    b = b123_ref[...]                      # (3, hid_p) f32 biases

    h = jnp.dot(x_ref[...].astype(wd), w1_ref[...],
                preferred_element_type=jnp.float32)
    h = jnp.maximum(h + b[0:1, :], 0.0)

    h = jnp.dot(h.astype(wd), w23_ref[0],
                preferred_element_type=jnp.float32)
    h = jnp.maximum(h + b[1:2, :], 0.0)

    h = jnp.dot(h.astype(wd), w23_ref[1],
                preferred_element_type=jnp.float32)
    h = jnp.maximum(h + b[2:3, :], 0.0)

    out = jnp.dot(h.astype(wd), w4_ref[...],
                  preferred_element_type=jnp.float32)
    o_ref[...] = (out + b4_ref[...]).astype(o_ref.dtype)


# ----------------------------------------------------------------------------
# One-time parameter preparation (padding hoisted out of the forward path).
# ----------------------------------------------------------------------------
def prepare_params(params, *, weight_dtype=jnp.float32):
    """Pad output/hidden feature dims to 128 lanes, stack w2/w3 and b1..b3.

    Padding is exact: padded input lanes hit zero weight rows, padded hidden
    lanes get bias 0 -> ReLU(0) = 0, padded output lanes are sliced off.
    """
    w1, w2, w3, w4 = params["w1"], params["w2"], params["w3"], params["w4"]
    b1, b2, b3, b4 = params["b1"], params["b2"], params["b3"], params["b4"]

    in_size, hid = w1.shape
    out_size = w4.shape[1]
    hid_p = _round_up(hid, _LANE)
    out_p = _round_up(out_size, _LANE)

    def pad2(a, rows, cols):
        return jnp.pad(a, ((0, rows - a.shape[0]), (0, cols - a.shape[1])))

    def pad_bias(b, cols):
        b = b.reshape(1, -1)
        return jnp.pad(b, ((0, 0), (0, cols - b.shape[1])))

    w1p = pad2(w1, in_size, hid_p)                         # (in, hid_p): K unpadded
    w23p = jnp.stack([pad2(w2, hid_p, hid_p),
                      pad2(w3, hid_p, hid_p)])             # (2, hid_p, hid_p)
    w4p = pad2(w4, hid_p, out_p)                           # (hid_p, out_p)
    b123 = jnp.concatenate([pad_bias(b1, hid_p),
                            pad_bias(b2, hid_p),
                            pad_bias(b3, hid_p)], axis=0)  # (3, hid_p) f32
    b4p = pad_bias(b4, out_p)                              # (1, out_p) f32

    return {
        "w1": w1p.astype(weight_dtype),
        "w23": w23p.astype(weight_dtype),
        "w4": w4p.astype(weight_dtype),
        "b123": b123.astype(jnp.float32),
        "b4": b4p.astype(jnp.float32),
        "in_size": in_size,
        "out_size": out_size,
        "hid_p": hid_p,
        "out_p": out_p,
    }


def _xla_forward(x, p):
    """Small-batch fallback path (plain XLA), uses the same prepared params."""
    wd = p["w1"].dtype
    b = p["b123"]
    h = jnp.maximum(jnp.dot(x.astype(wd), p["w1"],
                            preferred_element_type=jnp.float32) + b[0], 0.0)
    h = jnp.maximum(jnp.dot(h.astype(wd), p["w23"][0],
                            preferred_element_type=jnp.float32) + b[1], 0.0)
    h = jnp.maximum(jnp.dot(h.astype(wd), p["w23"][1],
                            preferred_element_type=jnp.float32) + b[2], 0.0)
    out = jnp.dot(h.astype(wd), p["w4"],
                  preferred_element_type=jnp.float32) + p["b4"]
    return out[:, :p["out_size"]].astype(x.dtype)


# ----------------------------------------------------------------------------
# Forward pass.
# ----------------------------------------------------------------------------
def dqn_forward(x, prepared, *, block_b=1024, min_pallas_batch=256):
    """DQN forward via one pallas_call with a batch grid.

    x: (B, input_size) float32.
    prepared: output of prepare_params().
    """
    B, in_feat = x.shape
    in_size = prepared["in_size"]
    out_size = prepared["out_size"]
    hid_p = prepared["hid_p"]
    out_p = prepared["out_p"]
    assert in_feat == in_size

    # Small batches: pallas_call fixed cost dwarfs the work -> plain XLA.
    if B < max(min_pallas_batch, _SUBLANE):
        return _xla_forward(x, prepared)

    w1, w23, w4 = prepared["w1"], prepared["w23"], prepared["w4"]
    b123, b4 = prepared["b123"], prepared["b4"]

    # Batch tile: as large as block_b, but capped so the grid has >= 2 steps
    # (keeps both v7x TensorCores busy via the "parallel" batch axis).
    tb = max(_SUBLANE, min(_round_up(block_b, _SUBLANE),
                           _round_up(pl.cdiv(B, 2), _SUBLANE)))
    grid = (pl.cdiv(B, tb),)   # no batch padding; partial last tile is masked

    # Resident operands: same block every grid step, single-buffered.
    def resident(shape):
        return pl.BlockSpec(shape, lambda i: (0,) * len(shape),
                            pipeline_mode=pl.Buffered(1))

    wbytes = jnp.dtype(w1.dtype).itemsize
    flops = 2 * B * (in_size * hid_p + 2 * hid_p * hid_p + hid_p * out_p)
    bytes_accessed = (
        4 * B * (in_size + out_p)
        + wbytes * (in_size * hid_p + 2 * hid_p * hid_p + hid_p * out_p)
        + 4 * (3 * hid_p + out_p))

    out_padded = pl.pallas_call(
        dqn_kernel,
        out_shape=jax.ShapeDtypeStruct((B, out_p), x.dtype),
        grid=grid,
        in_specs=[
            pl.BlockSpec((tb, in_size), lambda i: (i, 0)),  # x: batch-tiled, unpadded K
            resident((in_size, hid_p)),                      # w1
            resident((2, hid_p, hid_p)),                     # w2 | w3 stacked
            resident((hid_p, out_p)),                        # w4
            resident((3, hid_p)),                            # b1 | b2 | b3 stacked
            resident((1, out_p)),                            # b4
        ],
        out_specs=pl.BlockSpec((tb, out_p), lambda i: (i, 0)),
        compiler_params=pltpu.CompilerParams(
            dimension_semantics=("parallel",)),
        cost_estimate=pl.CostEstimate(
            flops=flops, transcendentals=0, bytes_accessed=bytes_accessed),
    )(x, w1, w23, w4, b123, b4)

    return out_padded[:, :out_size]


# ----------------------------------------------------------------------------
# Init + pure-JAX reference (matches the PyTorch module semantics).
# ----------------------------------------------------------------------------
def init_dqn_params(key, input_size, output_size, neurons_per_layer,
                    dtype=jnp.float32):
    """Mirrors nn.Linear's U(-1/sqrt(fan_in), 1/sqrt(fan_in)) init.

    Weights stored transposed, shape (in_features, out_features); biases (1, out).
    """
    sizes = [
        (input_size, neurons_per_layer),
        (neurons_per_layer, neurons_per_layer),
        (neurons_per_layer, neurons_per_layer),
        (neurons_per_layer, output_size),
    ]
    params = {}
    keys = jax.random.split(key, 2 * len(sizes))
    for i, (fan_in, fan_out) in enumerate(sizes):
        bound = 1.0 / (fan_in ** 0.5)
        wk, bk = keys[2 * i], keys[2 * i + 1]
        params[f"w{i + 1}"] = jax.random.uniform(
            wk, (fan_in, fan_out), dtype=dtype, minval=-bound, maxval=bound)
        params[f"b{i + 1}"] = jax.random.uniform(
            bk, (1, fan_out), dtype=dtype, minval=-bound, maxval=bound)
    return params


def dqn_reference(x, params):
    h = jnp.maximum(x @ params["w1"] + params["b1"], 0.0)
    h = jnp.maximum(h @ params["w2"] + params["b2"], 0.0)
    h = jnp.maximum(h @ params["w3"] + params["b3"], 0.0)
    return h @ params["w4"] + params["b4"]


if __name__ == "__main__":
    # Small shapes consistent with a DQN state->Q-values MLP.
    batch = 8
    input_size = 8          # state dimension
    output_size = 4         # number of actions
    neurons_per_layer = 32  # hidden width

    key = jax.random.PRNGKey(0)
    pkey, xkey = jax.random.split(key)
    params = init_dqn_params(pkey, input_size, output_size, neurons_per_layer)
    prepared_f32 = prepare_params(params)  # pad once, reuse every call

    x = jax.random.normal(xkey, (batch, input_size), dtype=jnp.float32)
    ref = dqn_reference(x, params)

    # Force the Pallas kernel path even at tiny batch for the demo.
    out = jax.block_until_ready(dqn_forward(x, prepared_f32, min_pallas_batch=0))
    assert out.shape == (batch, output_size)
    assert jnp.allclose(out, ref, atol=1e-5, rtol=1e-5)

    # Multi-grid-step path with a partial last tile (B=1000 -> tb=504, grid=2).
    xb = jax.random.normal(jax.random.PRNGKey(1), (1000, input_size),
                           dtype=jnp.float32)
    refb = dqn_reference(xb, params)
    outb = jax.block_until_ready(dqn_forward(xb, prepared_f32,
                                             min_pallas_batch=0))
    assert outb.shape == (1000, output_size)
    assert jnp.allclose(outb, refb, atol=1e-5, rtol=1e-5)

    # Small-batch XLA fallback path (default threshold).
    out_small = jax.block_until_ready(dqn_forward(x, prepared_f32))
    assert jnp.allclose(out_small, ref, atol=1e-5, rtol=1e-5)

    # bf16-weight path (v5e/v6e/v7x MXU-rate optimization); looser tolerance.
    prepared_bf16 = prepare_params(params, weight_dtype=jnp.bfloat16)
    outb16 = jax.block_until_ready(dqn_forward(xb, prepared_bf16,
                                               min_pallas_batch=0))
    assert outb16.shape == (1000, output_size)
    assert jnp.allclose(outb16, refb, atol=5e-2, rtol=5e-2)

    print("KERNEL_OK")
</pallas_src>

<mosaic_0001>
module attributes {stable_mosaic.version = 11 : i64} {
  func.func @dqn_kernel(%arg0: i32, %arg1: memref<8x8xf32, #tpu.memory_space<vmem>>, %arg2: memref<8x128xf32, #tpu.memory_space<vmem>>, %arg3: memref<2x128x128xf32, #tpu.memory_space<vmem>>, %arg4: memref<128x128xf32, #tpu.memory_space<vmem>>, %arg5: memref<3x128xf32, #tpu.memory_space<vmem>>, %arg6: memref<1x128xf32, #tpu.memory_space<vmem>>, %arg7: memref<8x128xf32, #tpu.memory_space<vmem>>) attributes {dimension_semantics = [#tpu.dimension_semantics<parallel>], iteration_bounds = array<i64: 1>, scalar_prefetch = 0 : i64, scratch_operands = 0 : i64, tpu.core_type = #tpu.core_type<tc>, window_params = [{transform_indices = @transform_0, window_bounds = array<i64: 8, 8>}, {pipeline_mode = #tpu.pipeline_mode<synchronous>, transform_indices = @transform_1, window_bounds = array<i64: 8, 128>}, {pipeline_mode = #tpu.pipeline_mode<synchronous>, transform_indices = @transform_2, window_bounds = array<i64: 2, 128, 128>}, {pipeline_mode = #tpu.pipeline_mode<synchronous>, transform_indices = @transform_3, window_bounds = array<i64: 128, 128>}, {pipeline_mode = #tpu.pipeline_mode<synchronous>, transform_indices = @transform_4, window_bounds = array<i64: 3, 128>}, {pipeline_mode = #tpu.pipeline_mode<synchronous>, transform_indices = @transform_5, window_bounds = array<i64: 1, 128>}, {transform_indices = @transform_6, window_bounds = array<i64: 8, 128>}]} {
    %c0 = arith.constant 0 : index
    %c0_0 = arith.constant 0 : index
    %0 = vector.load %arg5[%c0, %c0_0] : memref<3x128xf32, #tpu.memory_space<vmem>>, vector<3x128xf32>
    %c0_1 = arith.constant 0 : index
    %c0_2 = arith.constant 0 : index
    %1 = vector.load %arg1[%c0_1, %c0_2] : memref<8x8xf32, #tpu.memory_space<vmem>>, vector<8x8xf32>
    %c0_3 = arith.constant 0 : index
    %c0_4 = arith.constant 0 : index
    %2 = vector.load %arg2[%c0_3, %c0_4] : memref<8x128xf32, #tpu.memory_space<vmem>>, vector<8x128xf32>
    %cst = arith.constant dense<0.000000e+00> : vector<8x128xf32>
    %3 = tpu.matmul %1, %2, %cst {dimension_numbers = #tpu.dot_dimension_numbers<[1], [0], [0], [1], [0, 0, 1, 1], [], []>} : vector<8x8xf32>, vector<8x128xf32>, vector<8x128xf32> -> vector<8x128xf32>
    %4 = vector.extract_strided_slice %0 {offsets = [0, 0], sizes = [1, 128], strides = [1, 1]} : vector<3x128xf32> to vector<1x128xf32>
    %5 = vector.broadcast %4 : vector<1x128xf32> to vector<8x128xf32>
    %6 = arith.addf %3, %5 : vector<8x128xf32>
    %cst_5 = arith.constant 0.000000e+00 : f32
    %7 = vector.broadcast %cst_5 : f32 to vector<8x128xf32>
    %8 = arith.maximumf %6, %7 : vector<8x128xf32>
    %c0_6 = arith.constant 0 : index
    %c0_7 = arith.constant 0 : index
    %c0_8 = arith.constant 0 : index
    %9 = vector.load %arg3[%c0_6, %c0_7, %c0_8] : memref<2x128x128xf32, #tpu.memory_space<vmem>>, vector<1x128x128xf32>
    %10 = vector.shape_cast %9 : vector<1x128x128xf32> to vector<128x128xf32>
    %cst_9 = arith.constant dense<0.000000e+00> : vector<8x128xf32>
    %11 = tpu.matmul %8, %10, %cst_9 {dimension_numbers = #tpu.dot_dimension_numbers<[1], [0], [0], [1], [0, 0, 1, 1], [], []>} : vector<8x128xf32>, vector<128x128xf32>, vector<8x128xf32> -> vector<8x128xf32>
    %12 = vector.extract_strided_slice %0 {offsets = [1, 0], sizes = [1, 128], strides = [1, 1]} : vector<3x128xf32> to vector<1x128xf32>
    %13 = vector.broadcast %12 : vector<1x128xf32> to vector<8x128xf32>
    %14 = arith.addf %11, %13 : vector<8x128xf32>
    %cst_10 = arith.constant 0.000000e+00 : f32
    %15 = vector.broadcast %cst_10 : f32 to vector<8x128xf32>
    %16 = arith.maximumf %14, %15 : vector<8x128xf32>
    %c1 = arith.constant 1 : index
    %c0_11 = arith.constant 0 : index
    %c0_12 = arith.constant 0 : index
    %17 = vector.load %arg3[%c1, %c0_11, %c0_12] : memref<2x128x128xf32, #tpu.memory_space<vmem>>, vector<1x128x128xf32>
    %18 = vector.shape_cast %17 : vector<1x128x128xf32> to vector<128x128xf32>
    %cst_13 = arith.constant dense<0.000000e+00> : vector<8x128xf32>
    %19 = tpu.matmul %16, %18, %cst_13 {dimension_numbers = #tpu.dot_dimension_numbers<[1], [0], [0], [1], [0, 0, 1, 1], [], []>} : vector<8x128xf32>, vector<128x128xf32>, vector<8x128xf32> -> vector<8x128xf32>
    %20 = vector.extract_strided_slice %0 {offsets = [2, 0], sizes = [1, 128], strides = [1, 1]} : vector<3x128xf32> to vector<1x128xf32>
    %21 = vector.broadcast %20 : vector<1x128xf32> to vector<8x128xf32>
    %22 = arith.addf %19, %21 : vector<8x128xf32>
    %cst_14 = arith.constant 0.000000e+00 : f32
    %23 = vector.broadcast %cst_14 : f32 to vector<8x128xf32>
    %24 = arith.maximumf %22, %23 : vector<8x128xf32>
    %c0_15 = arith.constant 0 : index
    %c0_16 = arith.constant 0 : index
    %25 = vector.load %arg4[%c0_15, %c0_16] : memref<128x128xf32, #tpu.memory_space<vmem>>, vector<128x128xf32>
    %cst_17 = arith.constant dense<0.000000e+00> : vector<8x128xf32>
    %26 = tpu.matmul %24, %25, %cst_17 {dimension_numbers = #tpu.dot_dimension_numbers<[1], [0], [0], [1], [0, 0, 1, 1], [], []>} : vector<8x128xf32>, vector<128x128xf32>, vector<8x128xf32> -> vector<8x128xf32>
    %c0_18 = arith.constant 0 : index
    %c0_19 = arith.constant 0 : index
    %27 = vector.load %arg6[%c0_18, %c0_19] : memref<1x128xf32, #tpu.memory_space<vmem>>, vector<1x128xf32>
    %28 = vector.broadcast %27 : vector<1x128xf32> to vector<8x128xf32>
    %29 = arith.addf %26, %28 : vector<8x128xf32>
    %c0_20 = arith.constant 0 : index
    %c0_21 = arith.constant 0 : index
    %30 = vector.load %arg7[%c0_20, %c0_21] : memref<8x128xf32, #tpu.memory_space<vmem>>, vector<8x128xf32>
    tpu.vector_store %arg7[%c0_20, %c0_21], %29 {strides = array<i32>} : memref<8x128xf32, #tpu.memory_space<vmem>>, vector<8x128xf32>,
    return
  }
  func.func @transform_0(%arg0: i32) -> (i32, i32) {
    %c0_i32 = arith.constant 0 : i32
    %c0_i32_0 = arith.constant 0 : i32
    return %arg0, %c0_i32 : i32, i32
  }
  func.func @transform_1(%arg0: i32) -> (i32, i32) {
    %c0_i32 = arith.constant 0 : i32
    %c0_i32_0 = arith.constant 0 : i32
    %c0_i32_1 = arith.constant 0 : i32
    return %c0_i32, %c0_i32_0 : i32, i32
  }
  func.func @transform_2(%arg0: i32) -> (i32, i32, i32) {
    %c0_i32 = arith.constant 0 : i32
    %c0_i32_0 = arith.constant 0 : i32
    %c0_i32_1 = arith.constant 0 : i32
    %c0_i32_2 = arith.constant 0 : i32
    return %c0_i32, %c0_i32_0, %c0_i32_1 : i32, i32, i32
  }
  func.func @transform_3(%arg0: i32) -> (i32, i32) {
    %c0_i32 = arith.constant 0 : i32
    %c0_i32_0 = arith.constant 0 : i32
    %c0_i32_1 = arith.constant 0 : i32
    return %c0_i32, %c0_i32_0 : i32, i32
  }
  func.func @transform_4(%arg0: i32) -> (i32, i32) {
    %c0_i32 = arith.constant 0 : i32
    %c0_i32_0 = arith.constant 0 : i32
    %c0_i32_1 = arith.constant 0 : i32
    return %c0_i32, %c0_i32_0 : i32, i32
  }
  func.func @transform_5(%arg0: i32) -> (i32, i32) {
    %c0_i32 = arith.constant 0 : i32
    %c0_i32_0 = arith.constant 0 : i32
    %c0_i32_1 = arith.constant 0 : i32
    return %c0_i32, %c0_i32_0 : i32, i32
  }
  func.func @transform_6(%arg0: i32) -> (i32, i32) {
    %c0_i32 = arith.constant 0 : i32
    %c0_i32_0 = arith.constant 0 : i32
    return %arg0, %c0_i32 : i32, i32
  }
}

</mosaic_0001>

<llo_original>
// kernel: tpu_custom_call.1
$region0: #{tpu_custom_call.1}
  #allocation0 [shape = 'u32[]', space=smem, size = 0x4, offset = 0x4, fixed_abs, tag = 'smem constant byte address 0x4 - core index']
  #allocation1 [shape = 'u32[144,128]{1,0:T(1,128)}', space=vmem, size = 0x12000, scoped, tag = 'internal scratch']
  %s0 = inlined_call_operand.hbm [shape: f32[8,8], index: 0, kind: input, shape index: {}]
  %s1 = inlined_call_operand.hbm [shape: f32[8,128], index: 1, kind: input, shape index: {}]
  %s2 = inlined_call_operand.hbm [shape: f32[2,128,128], index: 2, kind: input, shape index: {}]
  %s3 = inlined_call_operand.hbm [shape: f32[128,128], index: 3, kind: input, shape index: {}]
  %s4 = inlined_call_operand.vmem [shape: f32[3,128], index: 4, kind: input, shape index: {}]
  %s5 = inlined_call_operand.vmem [shape: f32[1,128], index: 5, kind: input, shape index: {}]
  %s6 = inlined_call_operand.hbm [shape: f32[8,128], index: 6, kind: output, shape index: {}]
  %s7 = sld [smem:[#allocation0]]
  $region50: #{tpu_custom_call.1} parent=0
    _
  %s9 = ssub.s32 1, %s7
  %s10 = scalar_select 0, %s9, %s7
  $region1: #{tpu_custom_call.1} parent=0
    #allocation2 [shape = 'u8[4096]{0}', space=vmem, size = 0x1000, scoped, tag = 'input window, operand 0, single buffered']
    #allocation3 [shape = 's32[1]{0}', space=sflag, size = 0x4, scoped, tag = 'scoped memory for tpu_custom_call.1']
    #allocation4 [shape = 's32[1]{0}', space=sflag, size = 0x4, scoped, tag = 'scoped memory for tpu_custom_call.1']
    #allocation5 [shape = 'u8[4096]{0}', space=vmem, size = 0x1000, scoped, tag = 'input window, operand 1, single buffered']
    #allocation6 [shape = 's32[1]{0}', space=sflag, size = 0x4, scoped, tag = 'scoped memory for tpu_custom_call.1']
    #allocation7 [shape = 'u8[131072]{0}', space=vmem, size = 0x20000, scoped, tag = 'input window, operand 2, single buffered']
    #allocation8 [shape = 'u8[65536]{0}', space=vmem, size = 0x10000, scoped, tag = 'input window, operand 3, single buffered']
    #allocation9 [shape = 's32[1]{0}', space=sflag, size = 0x4, scoped, tag = 'scoped memory for tpu_custom_call.1']
    #allocation10 [shape = 'u8[4096]{0}', space=vmem, size = 0x1000, scoped, tag = 'output window, operand 0, single buffered']
    %11 = vsyncpa [#allocation3], 0
    %12 = vsyncpa [#allocation6], 0
    %13 = vsyncpa [#allocation9], 0
    %14 = vsyncpa [#allocation4], 0
    // Predicated region
    $region2: #{tpu_custom_call.1} parent=1 // pred_check
      _
    $region3: #{tpu_custom_call.1} parent=1 // pred_check_branch
      %16 = sbr.rel (0) target = $region5
    $region4: #{tpu_custom_call.1} parent=1 // pred_region
      %s18 = ssub.s32 128, 128
      %19 = vsyncadd [#allocation3], %s18
      %s21 = sshll.u32 [#allocation2], 4
      %s22 = int_to_ptr.vmem [resolvable:$true] %s21
      %24 = dma.hbm_to_vmem [thread:$0]  %s0, 128, %s22, [#allocation3]
    $region5: #{tpu_custom_call.1} parent=1 // pred_fallthru
      _
    // Predicated region
    $region6: #{tpu_custom_call.1} parent=1 // pred_check
      _
    $region7: #{tpu_custom_call.1} parent=1 // pred_check_branch
      %26 = sbr.rel (0) target = $region9
    $region8: #{tpu_custom_call.1} parent=1 // pred_region
      %s28 = ssub.s32 128, 128
      %29 = vsyncadd [#allocation6], %s28
      %s31 = sshll.u32 [#allocation5], 4
      %s32 = int_to_ptr.vmem [resolvable:$true] %s31
      %34 = dma.hbm_to_vmem [thread:$0]  %s1, 128, %s32, [#allocation6]
    $region9: #{tpu_custom_call.1} parent=1 // pred_fallthru
      _
    // Predicated region
    $region10: #{tpu_custom_call.1} parent=1 // pred_check
      _
    $region11: #{tpu_custom_call.1} parent=1 // pred_check_branch
      %36 = sbr.rel (0) target = $region13
    $region12: #{tpu_custom_call.1} parent=1 // pred_region
      %s38 = ssub.s32 4096, 4096
      %39 = vsyncadd [#allocation6], %s38
      %s40 = sshll.u32 [#allocation7], 4
      %s41 = int_to_ptr.vmem [resolvable:$true] %s40
      %46 = dma.hbm_to_vmem [thread:$0]  %s2, 4096, %s41, [#allocation6], 128, 128, 8
    $region13: #{tpu_custom_call.1} parent=1 // pred_fallthru
      _
    // Predicated region
    $region14: #{tpu_custom_call.1} parent=1 // pred_check
      _
    $region15: #{tpu_custom_call.1} parent=1 // pred_check_branch
      %48 = sbr.rel (0) target = $region17
    $region16: #{tpu_custom_call.1} parent=1 // pred_region
      %s50 = ssub.s32 2048, 2048
      %51 = vsyncadd [#allocation9], %s50
      %s52 = sshll.u32 [#allocation8], 4
      %s53 = int_to_ptr.vmem [resolvable:$true] %s52
      %58 = dma.hbm_to_vmem [thread:$0]  %s3, 2048, %s53, [#allocation9], 128, 128, 8
    $region17: #{tpu_custom_call.1} parent=1 // pred_fallthru
      _
    // Predicated region
    $region18: #{tpu_custom_call.1} parent=1 // pred_check
      _
    $region19: #{tpu_custom_call.1} parent=1 // pred_check_branch
      %60 = sbr.rel (0) target = $region21
    $region20: #{tpu_custom_call.1} parent=1 // pred_region
      _
    $region21: #{tpu_custom_call.1} parent=1 // pred_fallthru
      _
    // Predicated region
    $region22: #{tpu_custom_call.1} parent=1 // pred_check
      _
    $region23: #{tpu_custom_call.1} parent=1 // pred_check_branch
      %62 = sbr.rel (0) target = $region25
    $region24: #{tpu_custom_call.1} parent=1 // pred_region
      _
    $region25: #{tpu_custom_call.1} parent=1 // pred_fallthru
      _
    // Predicated region
    $region26: #{tpu_custom_call.1} parent=1 // pred_check
      _
    $region27: #{tpu_custom_call.1} parent=1 // pred_check_branch
      %64 = sbr.rel (0) target = $region29
    $region28: #{tpu_custom_call.1} parent=1 // pred_region
      %65 = dma.done [#allocation3], 128
    $region29: #{tpu_custom_call.1} parent=1 // pred_fallthru
      _
    // Predicated region
    $region30: #{tpu_custom_call.1} parent=1 // pred_check
      _
    $region31: #{tpu_custom_call.1} parent=1 // pred_check_branch
      %67 = sbr.rel (0) target = $region33
    $region32: #{tpu_custom_call.1} parent=1 // pred_region
      %68 = dma.done [#allocation6], 128
    $region33: #{tpu_custom_call.1} parent=1 // pred_fallthru
      _
    // Predicated region
    $region34: #{tpu_custom_call.1} parent=1 // pred_check
      _
    $region35: #{tpu_custom_call.1} parent=1 // pred_check_branch
      %70 = sbr.rel (0) target = $region37
    $region36: #{tpu_custom_call.1} parent=1 // pred_region
      %71 = dma.done [#allocation6], 4096
    $region37: #{tpu_custom_call.1} parent=1 // pred_fallthru
      _
    // Predicated region
    $region38: #{tpu_custom_call.1} parent=1 // pred_check
      _
    $region39: #{tpu_custom_call.1} parent=1 // pred_check_branch
      %73 = sbr.rel (0) target = $region41
    $region40: #{tpu_custom_call.1} parent=1 // pred_region
      %74 = dma.done [#allocation9], 2048
    $region41: #{tpu_custom_call.1} parent=1 // pred_fallthru
      _
    %v75 = vld [vmem:[%s4] sm:$0x7]
    %v76 = vld [vmem:[#allocation2] sm:$0xff]
    %v77 = vld [vmem:[#allocation5] sm:$0xff]
    %v78 = vlaneseq
    %v79 = vshrl.u32 %v78, 7
    %v80 = vsub.s32 0, %v79
    %v81 = vrot.slane %v75, %v80
    %vm82 = vcmask 64512
    %v84 = vsel %vm82, %v76, 0
    %86 = vmatprep.subr.mxu0 0.0
    %87 = vmatpush1.msra.mxu0 0.0
    %88 = vmatprep.subr.mxu0 0.0
    %89 = vmatpush1.msra.mxu0 0.0
    %90 = vmatprep.subr.mxu0 0.0
    %91 = vmatpush1.msra.mxu0 0.0
    %92 = vmatprep.subr.mxu0 0.0
    %93 = vmatpush1.msra.mxu0 0.0
    %94 = vmatprep.subr.mxu0 0.0
    %95 = vmatpush1.msra.mxu0 0.0
    %96 = vmatprep.subr.mxu0 0.0
    %97 = vmatpush1.msra.mxu0 0.0
    %98 = vmatprep.subr.mxu0 0.0
    %99 = vmatpush1.msra.mxu0 0.0
    %100 = vmatprep.subr.mxu0 0.0
    %101 = vmatpush1.msra.mxu0 0.0
    %102 = vmatprep.subr.mxu0 0.0
    %103 = vmatpush1.msra.mxu0 0.0
    %104 = vmatprep.subr.mxu0 0.0
    %105 = vmatpush1.msra.mxu0 0.0
    %106 = vmatprep.subr.mxu0 0.0
    %107 = vmatpush1.msra.mxu0 0.0
    %108 = vmatprep.subr.mxu0 0.0
    %109 = vmatpush1.msra.mxu0 0.0
    %110 = vmatprep.subr.mxu0 0.0
    %111 = vmatpush1.msra.mxu0 0.0
    %112 = vmatprep.subr.mxu0 0.0
    %113 = vmatpush1.msra.mxu0 0.0
    %114 = vmatprep.subr.mxu0 0.0
    %115 = vmatpush1.msra.mxu0 0.0
    %116 = vmatprep.subr.mxu0 0.0
    %117 = vmatpush1.msra.mxu0 %v77
    %118 = vmatprep.subr.mxu0 0.0
    %119 = vmatpush2.msra.mxu0 0.0
    %120 = vmatprep.subr.mxu0 0.0
    %121 = vmatpush2.msra.mxu0 0.0
    %122 = vmatprep.subr.mxu0 0.0
    %123 = vmatpush2.msra.mxu0 0.0
    %124 = vmatprep.subr.mxu0 0.0
    %125 = vmatpush2.msra.mxu0 0.0
    %126 = vmatprep.subr.mxu0 0.0
    %127 = vmatpush2.msra.mxu0 0.0
    %128 = vmatprep.subr.mxu0 0.0
    %129 = vmatpush2.msra.mxu0 0.0
    %130 = vmatprep.subr.mxu0 0.0
    %131 = vmatpush2.msra.mxu0 0.0
    %132 = vmatprep.subr.mxu0 0.0
    %133 = vmatpush2.msra.mxu0 0.0
    %134 = vmatprep.subr.mxu0 0.0
    %135 = vmatpush2.msra.mxu0 0.0
    %136 = vmatprep.subr.mxu0 0.0
    %137 = vmatpush2.msra.mxu0 0.0
    %138 = vmatprep.subr.mxu0 0.0
    %139 = vmatpush2.msra.mxu0 0.0
    %140 = vmatprep.subr.mxu0 0.0
    %141 = vmatpush2.msra.mxu0 0.0
    %142 = vmatprep.subr.mxu0 0.0
    %143 = vmatpush2.msra.mxu0 0.0
    %144 = vmatprep.subr.mxu0 0.0
    %145 = vmatpush2.msra.mxu0 0.0
    %146 = vmatprep.subr.mxu0 0.0
    %147 = vmatpush2.msra.mxu0 0.0
    %148 = vmatprep.subr.mxu0 0.0
    %149 = vmatpush2.msra.mxu0 0.0
    %150 = vmatprep.mubr.f32.mxu0 0.0
    %151 = vmatmul.mubr.f32.gmra.mxu0 %v84
    %v152 = vpop.f32.mrf.mxu0
    %v153 = vadd.f32 %v81, %v152
    %v154 = vpop.f32.mrf.mxu0
    %155 = vdwg.mxu0
    %v156 = vmax.f32 %v153, 0.0
    %v157 = vld [vmem:[#allocation7] sm:$0xff]
    %v158 = vld [vmem:[#allocation7 + $0x8] sm:$0xff]
    %v159 = vld [vmem:[#allocation7 + $0x10] sm:$0xff]
    %v160 = vld [vmem:[#allocation7 + $0x18] sm:$0xff]
    %v161 = vld [vmem:[#allocation7 + $0x20] sm:$0xff]
    %v162 = vld [vmem:[#allocation7 + $0x28] sm:$0xff]
    %v163 = vld [vmem:[#allocation7 + $0x30] sm:$0xff]
    %v164 = vld [vmem:[#allocation7 + $0x38] sm:$0xff]
    %v165 = vld [vmem:[#allocation7 + $0x40] sm:$0xff]
    %v166 = vld [vmem:[#allocation7 + $0x48] sm:$0xff]
    %v167 = vld [vmem:[#allocation7 + $0x50] sm:$0xff]
    %v168 = vld [vmem:[#allocation7 + $0x58] sm:$0xff]
    %v169 = vld [vmem:[#allocation7 + $0x60] sm:$0xff]
    %v170 = vld [vmem:[#allocation7 + $0x68] sm:$0xff]
    %v171 = vld [vmem:[#allocation7 + $0x70] sm:$0xff]
    %v172 = vld [vmem:[#allocation7 + $0x78] sm:$0xff]
    %v173 = vlaneseq
    %v174 = vshrl.u32 %v173, 7
    %v175 = vsub.s32 1, %v174
    %v176 = vrot.slane %v75, %v175
    %177 = vmatprep.subr.mxu0 0.0
    %178 = vmatpush1.msra.mxu0 %v172
    %179 = vmatprep.subr.mxu0 0.0
    %180 = vmatpush1.msra.mxu0 %v171
    %181 = vmatprep.subr.mxu0 0.0
    %182 = vmatpush1.msra.mxu0 %v170
    %183 = vmatprep.subr.mxu0 0.0
    %184 = vmatpush1.msra.mxu0 %v169
    %185 = vmatprep.subr.mxu0 0.0
    %186 = vmatpush1.msra.mxu0 %v168
    %187 = vmatprep.subr.mxu0 0.0
    %188 = vmatpush1.msra.mxu0 %v167
    %189 = vmatprep.subr.mxu0 0.0
    %190 = vmatpush1.msra.mxu0 %v166
    %191 = vmatprep.subr.mxu0 0.0
    %192 = vmatpush1.msra.mxu0 %v165
    %193 = vmatprep.subr.mxu0 0.0
    %194 = vmatpush1.msra.mxu0 %v164
    %195 = vmatprep.subr.mxu0 0.0
    %196 = vmatpush1.msra.mxu0 %v163
    %197 = vmatprep.subr.mxu0 0.0
    %198 = vmatpush1.msra.mxu0 %v162
    %199 = vmatprep.subr.mxu0 0.0
    %200 = vmatpush1.msra.mxu0 %v161
    %201 = vmatprep.subr.mxu0 0.0
    %202 = vmatpush1.msra.mxu0 %v160
    %203 = vmatprep.subr.mxu0 0.0
    %204 = vmatpush1.msra.mxu0 %v159
    %205 = vmatprep.subr.mxu0 0.0
    %206 = vmatpush1.msra.mxu0 %v158
    %207 = vmatprep.subr.mxu0 0.0
    %208 = vmatpush1.msra.mxu0 %v157
    %209 = vmatprep.subr.mxu0 0.0
    %210 = vmatpush2.msra.mxu0 0.0
    %211 = vmatprep.subr.mxu0 0.0
    %212 = vmatpush2.msra.mxu0 0.0
    %213 = vmatprep.subr.mxu0 0.0
    %214 = vmatpush2.msra.mxu0 0.0
    %215 = vmatprep.subr.mxu0 0.0
    %216 = vmatpush2.msra.mxu0 0.0
    %217 = vmatprep.subr.mxu0 0.0
    %218 = vmatpush2.msra.mxu0 0.0
    %219 = vmatprep.subr.mxu0 0.0
    %220 = vmatpush2.msra.mxu0 0.0
    %221 = vmatprep.subr.mxu0 0.0
    %222 = vmatpush2.msra.mxu0 0.0
    %223 = vmatprep.subr.mxu0 0.0
    %224 = vmatpush2.msra.mxu0 0.0
    %225 = vmatprep.subr.mxu0 0.0
    %226 = vmatpush2.msra.mxu0 0.0
    %227 = vmatprep.subr.mxu0 0.0
    %228 = vmatpush2.msra.mxu0 0.0
    %229 = vmatprep.subr.mxu0 0.0
    %230 = vmatpush2.msra.mxu0 0.0
    %231 = vmatprep.subr.mxu0 0.0
    %232 = vmatpush2.msra.mxu0 0.0
    %233 = vmatprep.subr.mxu0 0.0
    %234 = vmatpush2.msra.mxu0 0.0
    %235 = vmatprep.subr.mxu0 0.0
    %236 = vmatpush2.msra.mxu0 0.0
    %237 = vmatprep.subr.mxu0 0.0
    %238 = vmatpush2.msra.mxu0 0.0
    %239 = vmatprep.subr.mxu0 0.0
    %240 = vmatpush2.msra.mxu0 0.0
    %241 = vmatprep.mubr.f32.mxu0 0.0
    %242 = vmatmul.mubr.f32.gmra.mxu0 %v156
    %v243 = vpop.f32.mrf.mxu0
    %v244 = vadd.f32 %v176, %v243
    %v245 = vpop.f32.mrf.mxu0
    %246 = vdwg.mxu0
    %v247 = vmax.f32 %v244, 0.0
    %s248 = scalar_lea.vmem [#allocation7], 128
    %v249 = vld [vmem:[%s248] sm:$0xff]
    %v250 = vld [vmem:[%s248 + $0x8] sm:$0xff]
    %v251 = vld [vmem:[%s248 + $0x10] sm:$0xff]
    %v252 = vld [vmem:[%s248 + $0x18] sm:$0xff]
    %v253 = vld [vmem:[%s248 + $0x20] sm:$0xff]
    %v254 = vld [vmem:[%s248 + $0x28] sm:$0xff]
    %v255 = vld [vmem:[%s248 + $0x30] sm:$0xff]
    %v256 = vld [vmem:[%s248 + $0x38] sm:$0xff]
    %v257 = vld [vmem:[%s248 + $0x40] sm:$0xff]
    %v258 = vld [vmem:[%s248 + $0x48] sm:$0xff]
    %v259 = vld [vmem:[%s248 + $0x50] sm:$0xff]
    %v260 = vld [vmem:[%s248 + $0x58] sm:$0xff]
    %v261 = vld [vmem:[%s248 + $0x60] sm:$0xff]
    %v262 = vld [vmem:[%s248 + $0x68] sm:$0xff]
    %v263 = vld [vmem:[%s248 + $0x70] sm:$0xff]
    %v264 = vld [vmem:[%s248 + $0x78] sm:$0xff]
    %v265 = vlaneseq
    %v266 = vshrl.u32 %v265, 7
    %v267 = vsub.s32 2, %v266
    %v268 = vrot.slane %v75, %v267
    %269 = vmatprep.subr.mxu0 0.0
    %270 = vmatpush1.msra.mxu0 %v264
    %271 = vmatprep.subr.mxu0 0.0
    %272 = vmatpush1.msra.mxu0 %v263
    %273 = vmatprep.subr.mxu0 0.0
    %274 = vmatpush1.msra.mxu0 %v262
    %275 = vmatprep.subr.mxu0 0.0
    %276 = vmatpush1.msra.mxu0 %v261
    %277 = vmatprep.subr.mxu0 0.0
    %278 = vmatpush1.msra.mxu0 %v260
    %279 = vmatprep.subr.mxu0 0.0
    %280 = vmatpush1.msra.mxu0 %v259
    %281 = vmatprep.subr.mxu0 0.0
    %282 = vmatpush1.msra.mxu0 %v258
    %283 = vmatprep.subr.mxu0 0.0
    %284 = vmatpush1.msra.mxu0 %v257
    %285 = vmatprep.subr.mxu0 0.0
    %286 = vmatpush1.msra.mxu0 %v256
    %287 = vmatprep.subr.mxu0 0.0
    %288 = vmatpush1.msra.mxu0 %v255
    %289 = vmatprep.subr.mxu0 0.0
    %290 = vmatpush1.msra.mxu0 %v254
    %291 = vmatprep.subr.mxu0 0.0
    %292 = vmatpush1.msra.mxu0 %v253
    %293 = vmatprep.subr.mxu0 0.0
    %294 = vmatpush1.msra.mxu0 %v252
    %295 = vmatprep.subr.mxu0 0.0
    %296 = vmatpush1.msra.mxu0 %v251
    %297 = vmatprep.subr.mxu0 0.0
    %298 = vmatpush1.msra.mxu0 %v250
    %299 = vmatprep.subr.mxu0 0.0
    %300 = vmatpush1.msra.mxu0 %v249
    %301 = vmatprep.subr.mxu0 0.0
    %302 = vmatpush2.msra.mxu0 0.0
    %303 = vmatprep.subr.mxu0 0.0
    %304 = vmatpush2.msra.mxu0 0.0
    %305 = vmatprep.subr.mxu0 0.0
    %306 = vmatpush2.msra.mxu0 0.0
    %307 = vmatprep.subr.mxu0 0.0
    %308 = vmatpush2.msra.mxu0 0.0
    %309 = vmatprep.subr.mxu0 0.0
    %310 = vmatpush2.msra.mxu0 0.0
    %311 = vmatprep.subr.mxu0 0.0
    %312 = vmatpush2.msra.mxu0 0.0
    %313 = vmatprep.subr.mxu0 0.0
    %314 = vmatpush2.msra.mxu0 0.0
    %315 = vmatprep.subr.mxu0 0.0
    %316 = vmatpush2.msra.mxu0 0.0
    %317 = vmatprep.subr.mxu0 0.0
    %318 = vmatpush2.msra.mxu0 0.0
    %319 = vmatprep.subr.mxu0 0.0
    %320 = vmatpush2.msra.mxu0 0.0
    %321 = vmatprep.subr.mxu0 0.0
    %322 = vmatpush2.msra.mxu0 0.0
    %323 = vmatprep.subr.mxu0 0.0
    %324 = vmatpush2.msra.mxu0 0.0
    %325 = vmatprep.subr.mxu0 0.0
    %326 = vmatpush2.msra.mxu0 0.0
    %327 = vmatprep.subr.mxu0 0.0
    %328 = vmatpush2.msra.mxu0 0.0
    %329 = vmatprep.subr.mxu0 0.0
    %330 = vmatpush2.msra.mxu0 0.0
    %331 = vmatprep.subr.mxu0 0.0
    %332 = vmatpush2.msra.mxu0 0.0
    %333 = vmatprep.mubr.f32.mxu0 0.0
    %334 = vmatmul.mubr.f32.gmra.mxu0 %v247
    %v335 = vpop.f32.mrf.mxu0
    %v336 = vadd.f32 %v268, %v335
    %v337 = vpop.f32.mrf.mxu0
    %338 = vdwg.mxu0
    %v339 = vmax.f32 %v336, 0.0
    %v340 = vld [vmem:[#allocation8] sm:$0xff]
    %v341 = vld [vmem:[#allocation8 + $0x8] sm:$0xff]
    %v342 = vld [vmem:[#allocation8 + $0x10] sm:$0xff]
    %v343 = vld [vmem:[#allocation8 + $0x18] sm:$0xff]
    %v344 = vld [vmem:[#allocation8 + $0x20] sm:$0xff]
    %v345 = vld [vmem:[#allocation8 + $0x28] sm:$0xff]
    %v346 = vld [vmem:[#allocation8 + $0x30] sm:$0xff]
    %v347 = vld [vmem:[#allocation8 + $0x38] sm:$0xff]
    %v348 = vld [vmem:[#allocation8 + $0x40] sm:$0xff]
    %v349 = vld [vmem:[#allocation8 + $0x48] sm:$0xff]
    %v350 = vld [vmem:[#allocation8 + $0x50] sm:$0xff]
    %v351 = vld [vmem:[#allocation8 + $0x58] sm:$0xff]
    %v352 = vld [vmem:[#allocation8 + $0x60] sm:$0xff]
    %v353 = vld [vmem:[#allocation8 + $0x68] sm:$0xff]
    %v354 = vld [vmem:[#allocation8 + $0x70] sm:$0xff]
    %v355 = vld [vmem:[#allocation8 + $0x78] sm:$0xff]
    %v356 = vld [vmem:[%s5] sm:$0x1]
    %v358 = vlaneseq
    %v359 = vshrl.u32 %v358, 7
    %v360 = vsub.s32 0, %v359
    %v361 = vrot.slane %v356, %v360
    %363 = vmatprep.subr.mxu0 0.0
    %364 = vmatpush1.msra.mxu0 %v355
    %365 = vmatprep.subr.mxu0 0.0
    %366 = vmatpush1.msra.mxu0 %v354
    %367 = vmatprep.subr.mxu0 0.0
    %368 = vmatpush1.msra.mxu0 %v353
    %369 = vmatprep.subr.mxu0 0.0
    %370 = vmatpush1.msra.mxu0 %v352
    %371 = vmatprep.subr.mxu0 0.0
    %372 = vmatpush1.msra.mxu0 %v351
    %373 = vmatprep.subr.mxu0 0.0
    %374 = vmatpush1.msra.mxu0 %v350
    %375 = vmatprep.subr.mxu0 0.0
    %376 = vmatpush1.msra.mxu0 %v349
    %377 = vmatprep.subr.mxu0 0.0
    %378 = vmatpush1.msra.mxu0 %v348
    %379 = vmatprep.subr.mxu0 0.0
    %380 = vmatpush1.msra.mxu0 %v347
    %381 = vmatprep.subr.mxu0 0.0
    %382 = vmatpush1.msra.mxu0 %v346
    %383 = vmatprep.subr.mxu0 0.0
    %384 = vmatpush1.msra.mxu0 %v345
    %385 = vmatprep.subr.mxu0 0.0
    %386 = vmatpush1.msra.mxu0 %v344
    %387 = vmatprep.subr.mxu0 0.0
    %388 = vmatpush1.msra.mxu0 %v343
    %389 = vmatprep.subr.mxu0 0.0
    %390 = vmatpush1.msra.mxu0 %v342
    %391 = vmatprep.subr.mxu0 0.0
    %392 = vmatpush1.msra.mxu0 %v341
    %393 = vmatprep.subr.mxu0 0.0
    %394 = vmatpush1.msra.mxu0 %v340
    %395 = vmatprep.subr.mxu0 0.0
    %396 = vmatpush2.msra.mxu0 0.0
    %397 = vmatprep.subr.mxu0 0.0
    %398 = vmatpush2.msra.mxu0 0.0
    %399 = vmatprep.subr.mxu0 0.0
    %400 = vmatpush2.msra.mxu0 0.0
    %401 = vmatprep.subr.mxu0 0.0
    %402 = vmatpush2.msra.mxu0 0.0
    %403 = vmatprep.subr.mxu0 0.0
    %404 = vmatpush2.msra.mxu0 0.0
    %405 = vmatprep.subr.mxu0 0.0
    %406 = vmatpush2.msra.mxu0 0.0
    %407 = vmatprep.subr.mxu0 0.0
    %408 = vmatpush2.msra.mxu0 0.0
    %409 = vmatprep.subr.mxu0 0.0
    %410 = vmatpush2.msra.mxu0 0.0
    %411 = vmatprep.subr.mxu0 0.0
    %412 = vmatpush2.msra.mxu0 0.0
    %413 = vmatprep.subr.mxu0 0.0
    %414 = vmatpush2.msra.mxu0 0.0
    %415 = vmatprep.subr.mxu0 0.0
    %416 = vmatpush2.msra.mxu0 0.0
    %417 = vmatprep.subr.mxu0 0.0
    %418 = vmatpush2.msra.mxu0 0.0
    %419 = vmatprep.subr.mxu0 0.0
    %420 = vmatpush2.msra.mxu0 0.0
    %421 = vmatprep.subr.mxu0 0.0
    %422 = vmatpush2.msra.mxu0 0.0
    %423 = vmatprep.subr.mxu0 0.0
    %424 = vmatpush2.msra.mxu0 0.0
    %425 = vmatprep.subr.mxu0 0.0
    %426 = vmatpush2.msra.mxu0 0.0
    %427 = vmatprep.mubr.f32.mxu0 0.0
    %428 = vmatmul.mubr.f32.gmra.mxu0 %v339
    %v429 = vpop.f32.mrf.mxu0
    %v430 = vadd.f32 %v361, %v429
    %v431 = vpop.f32.mrf.mxu0
    %432 = vdwg.mxu0
    %433 = vst [vmem:[#allocation10] sm:$0xff] %v430
    // Predicated region
    $region42: #{tpu_custom_call.1} parent=1 // pred_check
      _
    $region43: #{tpu_custom_call.1} parent=1 // pred_check_branch
      %435 = sbr.rel (0) target = $region45
    $region44: #{tpu_custom_call.1} parent=1 // pred_region
      %s437 = ssub.s32 128, 128
      %438 = vsyncadd [#allocation4], %s437
      %s440 = sshll.u32 [#allocation10], 4
      %s441 = int_to_ptr.vmem [resolvable:$true] %s440
      %443 = dma.vmem_to_hbm [thread:$0]  %s441, 128, %s6, [#allocation4]
    $region45: #{tpu_custom_call.1} parent=1 // pred_fallthru
      _
    // Predicated region
    $region46: #{tpu_custom_call.1} parent=1 // pred_check
      _
    $region47: #{tpu_custom_call.1} parent=1 // pred_check_branch
      %445 = sbr.rel (0) target = $region49
    $region48: #{tpu_custom_call.1} parent=1 // pred_region
      %446 = dma.done [#allocation4], 128
    $region49: #{tpu_custom_call.1} parent=1 // pred_fallthru
      _
    %447 = vsyncpa [#allocation3], 1
    %448 = vsyncpa [#allocation6], 1
    %449 = vsyncpa [#allocation9], 1
    %450 = vsyncpa [#allocation4], 1

</llo_original>
